<compile_context>
chip_gen: v5e
topology: v5e:2x2
jax: 0.10.0
libtpu: 0.0.40
codegen_flags: <defaults>
</compile_context>

<pallas_src>
import functools

import jax
import jax.numpy as jnp
from jax.experimental import pallas as pl
from jax.experimental.pallas import tpu as pltpu


# ---------------------------------------------------------------------------
# Kernels
# ---------------------------------------------------------------------------


def _se_fused_kernel(x_ref, w1_ref, b1_ref, a_ref, w2_ref, b2_ref, o_ref, *, inv_hw):
    """Fused pool -> excitation -> scale for bb images.

    x_ref/o_ref: (bb, C, HW)   w1: (C, Cr)   b1: (1, Cr)   a_ref: SMEM (1,)
    w2: (Cr, C)   b2: (1, C)
    """
    # Squeeze: lane-axis sum (XLU) * static 1/HW, accumulated in f32.
    y = jnp.sum(x_ref[...].astype(jnp.float32), axis=-1) * inv_hw        # (bb, C)

    # Excitation: Linear -> PReLU (single shared slope) -> Linear -> Sigmoid.
    z = jnp.dot(y, w1_ref[...], preferred_element_type=jnp.float32) + b1_ref[...]
    z = jnp.where(z >= 0.0, z, a_ref[0] * z)
    s = jnp.dot(z, w2_ref[...], preferred_element_type=jnp.float32) + b2_ref[...]
    s = jax.nn.sigmoid(s)                                                 # (bb, C)

    # Scale: re-read x from VMEM (don't keep it live in vregs across the
    # excitation); clean vld -> vmul -> vst stream hidden under the block DMA.
    o_ref[...] = (x_ref[...] * s[:, :, None]).astype(o_ref.dtype)


def _se_pool_excite_kernel(x_ref, w1_ref, b1_ref, a_ref, w2_ref, b2_ref,
                           s_ref, *, inv_hw, hw, hw_t):
    """Two-pass path, pass A: pooled sum over HW tiles + excitation on the last.

    grid = (B, n_hw).  x_ref: (1, C, hw_t).  s_ref: (1, C, 1) f32 output block,
    resident across the hw axis (same block index) -> used as the accumulator.
    """
    j = pl.program_id(1)

    @pl.when(j == 0)
    def _():
        s_ref[...] = jnp.zeros_like(s_ref)

    x = x_ref[...].astype(jnp.float32)
    if hw % hw_t != 0:
        # Mask out-of-bounds lanes of the last (partial) tile so the padded
        # part of the block cannot corrupt the pooled sum.
        lane = jax.lax.broadcasted_iota(jnp.int32, x.shape, 2)
        x = jnp.where(j * hw_t + lane < hw, x, 0.0)
    s_ref[...] += jnp.sum(x, axis=-1, keepdims=True)                      # (1, C, 1)

    @pl.when(j == pl.num_programs(1) - 1)
    def _():
        y = s_ref[...][:, :, 0] * inv_hw                                  # (1, C)
        z = jnp.dot(y, w1_ref[...], preferred_element_type=jnp.float32) + b1_ref[...]
        z = jnp.where(z >= 0.0, z, a_ref[0] * z)
        s = jax.nn.sigmoid(
            jnp.dot(z, w2_ref[...], preferred_element_type=jnp.float32) + b2_ref[...])
        s_ref[...] = s[:, :, None]


def _se_scale_kernel(x_ref, s_ref, o_ref):
    """Two-pass path, pass B: streaming scale. x/o: (1, C, hw_t), s: (1, C, 1)."""
    o_ref[...] = (x_ref[...] * s_ref[...]).astype(o_ref.dtype)


# ---------------------------------------------------------------------------
# Sizing helpers
# ---------------------------------------------------------------------------

_SLACK = 2 << 20  # Mosaic internal scratch / semaphores / misc headroom.


def _vmem_budget_bytes():
    """~85% of this generation's physical VMEM (headroom for Mosaic scratch)."""
    try:
        cap = int(pltpu.get_tpu_info().vmem_capacity_bytes)
    except Exception:
        cap = 64 << 20  # conservative fallback: v7x per-TensorCore VMEM
    return int(0.85 * cap)


def _pick_batch_tile(B, per_image_bytes, weight_bytes, budget):
    """Largest divisor of B whose double-buffered in+out blocks fit the VMEM
    budget, keeping the grid length >= 2 (so both v7x TensorCores get work)
    and stopping once the x block is comfortably past the HBM-roofline plateau."""
    target = 4 << 20
    bb = 1
    for d in range(1, B + 1):
        if B % d:
            continue
        if B >= 2 and B // d < 2:
            continue  # keep grid length >= 2 for megacore
        if 4 * d * per_image_bytes + 4 * weight_bytes + _SLACK > budget:
            continue
        bb = d
        if d * per_image_bytes >= target:
            break
    return bb


def _pick_hw_tile(HW, C, itemsize, budget):
    """HW tile for the two-pass path: multiple of 128 (or full HW), ~2 MiB."""
    if HW <= 128:
        return HW
    lanes = max(128, (2 << 20) // max(1, C * itemsize))
    hw_t = min(HW, lanes)
    hw_t = max(128, (hw_t // 128) * 128)
    while hw_t > 128 and 4 * C * hw_t * itemsize + _SLACK > budget:
        hw_t -= 128
    return hw_t


# ---------------------------------------------------------------------------
# Wrapper
# ---------------------------------------------------------------------------


def se_block(x, w1, b1, prelu_a, w2, b2, *, force_two_pass=False):
    """SEBlock forward.

    x: (B, C, H, W).  w1: (C, Cr) (= fc[0].weight.T), b1: (Cr,), prelu_a: scalar
    PReLU slope, w2: (Cr, C) (= fc[2].weight.T), b2: (C,).
    """
    B, C, H, W = x.shape
    Cr = w1.shape[1]
    HW = H * W
    itemsize = x.dtype.itemsize
    inv_hw = 1.0 / float(HW)

    xf = x.reshape(B, C, HW)                     # contiguous reshape: no HBM pass
    w1f = w1.astype(jnp.float32)
    w2f = w2.astype(jnp.float32)
    b1r = b1.reshape(1, Cr).astype(jnp.float32)
    b2r = b2.reshape(1, C).astype(jnp.float32)
    a = jnp.asarray(prelu_a, jnp.float32).reshape(1)   # SMEM scalar

    budget = _vmem_budget_bytes()
    weight_bytes = (w1f.size + w2f.size + b1r.size + b2r.size) * 4
    per_image_bytes = C * HW * itemsize
    fused_fits = 4 * per_image_bytes + 4 * weight_bytes + _SLACK <= budget

    weight_specs = [
        pl.BlockSpec((C, Cr), lambda *idx: (0,) * 2),            # w1 (resident)
        pl.BlockSpec((1, Cr), lambda *idx: (0,) * 2),            # b1
        pl.BlockSpec(memory_space=pltpu.MemorySpace.SMEM),       # PReLU slope
        pl.BlockSpec((Cr, C), lambda *idx: (0,) * 2),            # w2 (resident)
        pl.BlockSpec((1, C), lambda *idx: (0,) * 2),             # b2
    ]

    if fused_fits and not force_two_pass:
        # ---------------- Fused single pass ----------------
        bb = _pick_batch_tile(B, per_image_bytes, weight_bytes, budget)
        block_bytes = bb * per_image_bytes
        vmem_limit = min(max(4 * block_bytes + 4 * weight_bytes + _SLACK, 16 << 20),
                         budget)

        kernel = functools.partial(_se_fused_kernel, inv_hw=inv_hw)
        out = pl.pallas_call(
            kernel,
            out_shape=jax.ShapeDtypeStruct((B, C, HW), x.dtype),
            grid_spec=pltpu.PrefetchScalarGridSpec(
                num_scalar_prefetch=0,
                grid=(B // bb,),
                in_specs=[pl.BlockSpec((bb, C, HW), lambda i: (i, 0, 0))]
                         + weight_specs,
                out_specs=pl.BlockSpec((bb, C, HW), lambda i: (i, 0, 0)),
            ),
            compiler_params=pltpu.CompilerParams(
                # TODO(synk): when B == 1 this parallel grid has length 1 and one
                # v7x TensorCore idles; split the leading axis over HW halves then.
                dimension_semantics=("parallel",),
                vmem_limit_bytes=vmem_limit,
            ),
        )(xf, w1f, b1r, a, w2f, b2r)
        return out.reshape(B, C, H, W)

    # ---------------- Two-pass fallback (HW-tiled) ----------------
    hw_t = _pick_hw_tile(HW, C, itemsize, budget)
    n_hw = pl.cdiv(HW, hw_t)
    tile_bytes = C * hw_t * itemsize
    vmem_a = min(max(2 * tile_bytes + 4 * weight_bytes + _SLACK, 16 << 20), budget)
    vmem_b = min(max(4 * tile_bytes + _SLACK, 16 << 20), budget)

    pool_kernel = functools.partial(_se_pool_excite_kernel,
                                    inv_hw=inv_hw, hw=HW, hw_t=hw_t)
    s = pl.pallas_call(
        pool_kernel,
        out_shape=jax.ShapeDtypeStruct((B, C, 1), jnp.float32),
        grid_spec=pltpu.PrefetchScalarGridSpec(
            num_scalar_prefetch=0,
            grid=(B, n_hw),
            in_specs=[pl.BlockSpec((1, C, hw_t), lambda b, j: (b, 0, j))]
                     + weight_specs,
            out_specs=pl.BlockSpec((1, C, 1), lambda b, j: (b, 0, 0)),
        ),
        compiler_params=pltpu.CompilerParams(
            dimension_semantics=("parallel", "arbitrary"),
            vmem_limit_bytes=vmem_a,
        ),
    )(xf, w1f, b1r, a, w2f, b2r)

    out = pl.pallas_call(
        _se_scale_kernel,
        out_shape=jax.ShapeDtypeStruct((B, C, HW), x.dtype),
        grid_spec=pltpu.PrefetchScalarGridSpec(
            num_scalar_prefetch=0,
            grid=(B, n_hw),
            in_specs=[
                pl.BlockSpec((1, C, hw_t), lambda b, j: (b, 0, j)),
                pl.BlockSpec((1, C, 1), lambda b, j: (b, 0, 0)),
            ],
            out_specs=pl.BlockSpec((1, C, hw_t), lambda b, j: (b, 0, j)),
        ),
        compiler_params=pltpu.CompilerParams(
            dimension_semantics=("parallel", "parallel"),
            vmem_limit_bytes=vmem_b,
        ),
    )(xf, s)
    return out.reshape(B, C, H, W)


def reference_se_block(x, w1, b1, prelu_a, w2, b2):
    y = jnp.mean(x, axis=(2, 3))                          # (B, C)
    z = y @ w1 + b1
    z = jnp.where(z >= 0, z, prelu_a * z)
    s = jax.nn.sigmoid(z @ w2 + b2)                       # (B, C)
    return x * s[:, :, None, None]


if __name__ == "__main__":
    key = jax.random.PRNGKey(0)
    reduction = 16

    configs = [
        # (B, C, H, W, force_two_pass)
        (2, 64, 16, 16, False),   # fused path, H*W = 256 (lane-dense)
        (2, 64, 7, 7, False),     # fused path, H*W = 49 (no wrapper pad/slice)
        (2, 64, 14, 14, True),    # two-pass fallback with masked tail tile
    ]
    for B, C, H, W, force in configs:
        Cr = C // reduction
        k_x, k_w1, k_b1, k_w2, k_b2, key = jax.random.split(key, 6)
        x = jax.random.normal(k_x, (B, C, H, W), dtype=jnp.float32)

        # Synthetic params matching nn.Linear(C, Cr), nn.PReLU(), nn.Linear(Cr, C).
        w1 = jax.random.normal(k_w1, (C, Cr), dtype=jnp.float32) * 0.1   # fc[0].weight.T
        b1 = jax.random.normal(k_b1, (Cr,), dtype=jnp.float32) * 0.1     # fc[0].bias
        prelu_a = jnp.float32(0.25)                                      # nn.PReLU() default
        w2 = jax.random.normal(k_w2, (Cr, C), dtype=jnp.float32) * 0.1   # fc[2].weight.T
        b2 = jax.random.normal(k_b2, (C,), dtype=jnp.float32) * 0.1      # fc[2].bias

        out = jax.block_until_ready(
            se_block(x, w1, b1, prelu_a, w2, b2, force_two_pass=force))
        ref = reference_se_block(x, w1, b1, prelu_a, w2, b2)
        assert out.shape == x.shape
        assert jnp.allclose(out, ref, atol=1e-5, rtol=1e-5), (B, C, H, W, force)

    print("KERNEL_OK")
</pallas_src>

<mosaic_0001>
module attributes {stable_mosaic.version = 11 : i64} {
  func.func @_se_fused_kernel(%arg0: i32, %arg1: memref<1x64x256xf32, #tpu.memory_space<vmem>>, %arg2: memref<64x4xf32, #tpu.memory_space<vmem>>, %arg3: memref<1x4xf32, #tpu.memory_space<vmem>>, %arg4: memref<1xf32, #tpu.memory_space<smem>>, %arg5: memref<4x64xf32, #tpu.memory_space<vmem>>, %arg6: memref<1x64xf32, #tpu.memory_space<vmem>>, %arg7: memref<1x64x256xf32, #tpu.memory_space<vmem>>) attributes {dimension_semantics = [#tpu.dimension_semantics<parallel>], iteration_bounds = array<i64: 2>, scalar_prefetch = 0 : i64, scratch_operands = 0 : i64, tpu.core_type = #tpu.core_type<tc>, window_params = [{transform_indices = @transform_0, window_bounds = array<i64: 1, 64, 256>}, {pipeline_mode = #tpu.pipeline_mode<synchronous>, transform_indices = @transform_1, window_bounds = array<i64: 64, 4>}, {pipeline_mode = #tpu.pipeline_mode<synchronous>, transform_indices = @transform_2, window_bounds = array<i64: 1, 4>}, {transform_indices = @transform_3, window_bounds = array<i64: 1>}, {pipeline_mode = #tpu.pipeline_mode<synchronous>, transform_indices = @transform_4, window_bounds = array<i64: 4, 64>}, {pipeline_mode = #tpu.pipeline_mode<synchronous>, transform_indices = @transform_5, window_bounds = array<i64: 1, 64>}, {transform_indices = @transform_6, window_bounds = array<i64: 1, 64, 256>}]} {
    %c0 = arith.constant 0 : index
    %c0_0 = arith.constant 0 : index
    %c0_1 = arith.constant 0 : index
    %0 = vector.load %arg1[%c0, %c0_0, %c0_1] : memref<1x64x256xf32, #tpu.memory_space<vmem>>, vector<1x64x256xf32>
    %cst = arith.constant dense<0.000000e+00> : vector<1x64xf32>
    %1 = vector.multi_reduction <add>, %0, %cst [2] : vector<1x64x256xf32> to vector<1x64xf32>
    %cst_2 = arith.constant 3.906250e-03 : f32
    %2 = vector.broadcast %cst_2 : f32 to vector<1x64xf32>
    %3 = arith.mulf %1, %2 : vector<1x64xf32>
    %c0_3 = arith.constant 0 : index
    %c0_4 = arith.constant 0 : index
    %4 = vector.load %arg2[%c0_3, %c0_4] : memref<64x4xf32, #tpu.memory_space<vmem>>, vector<64x4xf32>
    %cst_5 = arith.constant dense<0.000000e+00> : vector<1x4xf32>
    %5 = tpu.matmul %3, %4, %cst_5 {dimension_numbers = #tpu.dot_dimension_numbers<[1], [0], [0], [1], [0, 0, 1, 1], [], []>} : vector<1x64xf32>, vector<64x4xf32>, vector<1x4xf32> -> vector<1x4xf32>
    %c0_6 = arith.constant 0 : index
    %c0_7 = arith.constant 0 : index
    %6 = vector.load %arg3[%c0_6, %c0_7] : memref<1x4xf32, #tpu.memory_space<vmem>>, vector<1x4xf32>
    %7 = arith.addf %5, %6 : vector<1x4xf32>
    %cst_8 = arith.constant 0.000000e+00 : f32
    %8 = vector.broadcast %cst_8 : f32 to vector<1x4xf32>
    %9 = arith.cmpf oge, %7, %8 : vector<1x4xf32>
    %c0_9 = arith.constant 0 : index
    %10 = memref.load %arg4[%c0_9] : memref<1xf32, #tpu.memory_space<smem>>
    %11 = vector.broadcast %10 : f32 to vector<1x4xf32>
    %12 = arith.mulf %11, %7 : vector<1x4xf32>
    %13 = arith.select %9, %7, %12 : vector<1x4xi1>, vector<1x4xf32>
    %c0_10 = arith.constant 0 : index
    %c0_11 = arith.constant 0 : index
    %14 = vector.load %arg5[%c0_10, %c0_11] : memref<4x64xf32, #tpu.memory_space<vmem>>, vector<4x64xf32>
    %cst_12 = arith.constant dense<0.000000e+00> : vector<1x64xf32>
    %15 = tpu.matmul %13, %14, %cst_12 {dimension_numbers = #tpu.dot_dimension_numbers<[1], [0], [0], [1], [0, 0, 1, 1], [], []>} : vector<1x4xf32>, vector<4x64xf32>, vector<1x64xf32> -> vector<1x64xf32>
    %c0_13 = arith.constant 0 : index
    %c0_14 = arith.constant 0 : index
    %16 = vector.load %arg6[%c0_13, %c0_14] : memref<1x64xf32, #tpu.memory_space<vmem>>, vector<1x64xf32>
    %17 = arith.addf %15, %16 : vector<1x64xf32>
    %18 = arith.negf %17 : vector<1x64xf32>
    %19 = math.exp %18 : vector<1x64xf32>
    %cst_15 = arith.constant 1.000000e+00 : f32
    %20 = vector.broadcast %cst_15 : f32 to vector<1x64xf32>
    %21 = arith.addf %20, %19 : vector<1x64xf32>
    %22 = arith.divf %20, %21 : vector<1x64xf32>
    %c0_16 = arith.constant 0 : index
    %c0_17 = arith.constant 0 : index
    %c0_18 = arith.constant 0 : index
    %23 = vector.load %arg1[%c0_16, %c0_17, %c0_18] : memref<1x64x256xf32, #tpu.memory_space<vmem>>, vector<1x64x256xf32>
    %24 = vector.shape_cast %22 : vector<1x64xf32> to vector<1x64x1xf32>
    %25 = vector.broadcast %24 : vector<1x64x1xf32> to vector<1x64x256xf32>
    %26 = arith.mulf %23, %25 : vector<1x64x256xf32>
    %c0_19 = arith.constant 0 : index
    %c0_20 = arith.constant 0 : index
    %c0_21 = arith.constant 0 : index
    %27 = vector.load %arg7[%c0_19, %c0_20, %c0_21] : memref<1x64x256xf32, #tpu.memory_space<vmem>>, vector<1x64x256xf32>
    tpu.vector_store %arg7[%c0_19, %c0_20, %c0_21], %26 {strides = array<i32>} : memref<1x64x256xf32, #tpu.memory_space<vmem>>, vector<1x64x256xf32>,
    return
  }
  func.func @transform_0(%arg0: i32) -> (i32, i32, i32) {
    %c0_i32 = arith.constant 0 : i32
    %c0_i32_0 = arith.constant 0 : i32
    %c0_i32_1 = arith.constant 0 : i32
    return %arg0, %c0_i32, %c0_i32_0 : i32, i32, i32
  }
  func.func @transform_1(%arg0: i32) -> (i32, i32) {
    %c0_i32 = arith.constant 0 : i32
    %c0_i32_0 = arith.constant 0 : i32
    %c0_i32_1 = arith.constant 0 : i32
    return %c0_i32, %c0_i32_0 : i32, i32
  }
  func.func @transform_2(%arg0: i32) -> (i32, i32) {
    %c0_i32 = arith.constant 0 : i32
    %c0_i32_0 = arith.constant 0 : i32
    %c0_i32_1 = arith.constant 0 : i32
    return %c0_i32, %c0_i32_0 : i32, i32
  }
  func.func @transform_3(%arg0: i32) -> i32 {
    %c0_i32 = arith.constant 0 : i32
    %c0_i32_0 = arith.constant 0 : i32
    return %c0_i32 : i32
  }
  func.func @transform_4(%arg0: i32) -> (i32, i32) {
    %c0_i32 = arith.constant 0 : i32
    %c0_i32_0 = arith.constant 0 : i32
    %c0_i32_1 = arith.constant 0 : i32
    return %c0_i32, %c0_i32_0 : i32, i32
  }
  func.func @transform_5(%arg0: i32) -> (i32, i32) {
    %c0_i32 = arith.constant 0 : i32
    %c0_i32_0 = arith.constant 0 : i32
    %c0_i32_1 = arith.constant 0 : i32
    return %c0_i32, %c0_i32_0 : i32, i32
  }
  func.func @transform_6(%arg0: i32) -> (i32, i32, i32) {
    %c0_i32 = arith.constant 0 : i32
    %c0_i32_0 = arith.constant 0 : i32
    %c0_i32_1 = arith.constant 0 : i32
    return %arg0, %c0_i32, %c0_i32_0 : i32, i32, i32
  }
}

</mosaic_0001>

<llo_original>
// kernel: tpu_custom_call.1
$region0: #{tpu_custom_call.1}
  #allocation0 [shape = 'u32[]', space=smem, size = 0x4, offset = 0x4, fixed_abs, tag = 'smem constant byte address 0x4 - core index']
  #allocation1 [shape = 'u32[72,128]{1,0:T(1,128)}', space=vmem, size = 0x9000, scoped, tag = 'internal scratch']
  #allocation2 [shape = 'f32[1]{0:T(128)S(6)}', space=smem, size = 0x200, scoped, tag = 'scoped memory for tpu_custom_call.1']
  %s0 = inlined_call_operand.hbm [shape: f32[2,64,256], index: 0, kind: input, shape index: {}]
  %s1 = inlined_call_operand.vmem [shape: f32[64,4], index: 1, kind: input, shape index: {}]
  %s2 = inlined_call_operand.vmem [shape: f32[1,4], index: 2, kind: input, shape index: {}]
  %s3 = inlined_call_operand.<no memory space> [shape: f32[1], index: 3, kind: input, shape index: {}]
  %s4 = inlined_call_operand.vmem [shape: f32[4,64], index: 4, kind: input, shape index: {}]
  %s5 = inlined_call_operand.vmem [shape: f32[1,64], index: 5, kind: input, shape index: {}]
  %s6 = inlined_call_operand.hbm [shape: f32[2,64,256], index: 6, kind: output, shape index: {}]
  %s7 = sld [smem:[#allocation0]]
  $region61: #{tpu_custom_call.1} parent=0
    _
  %s9 = ssub.s32 1, %s7
  %s10 = scalar_select 0, %s9, %s7
  %11 = sst [smem:[#allocation2]] %s3
  $region1: #{tpu_custom_call.1} parent=0
    #allocation3 [shape = 'u8[131072]{0}', space=vmem, size = 0x20000, scoped, tag = 'input window, operand 0']
    #allocation4 [shape = 's32[2]{0}', space=sflag, size = 0x8, scoped, tag = 'scoped memory for tpu_custom_call.1']
    #allocation5 [shape = 's32[2]{0}', space=sflag, size = 0x8, scoped, tag = 'scoped memory for tpu_custom_call.1']
    #allocation6 [shape = 'u8[131072]{0}', space=vmem, size = 0x20000, scoped, tag = 'output window, operand 0']
    %12 = vsyncpa [#allocation4], 0
    %s13 = scalar_lea.sflag [#allocation4], 1
    %14 = vsyncpa %s13, 0
    %15 = vsyncpa [#allocation5], 0
    %s16 = scalar_lea.sflag [#allocation5], 1
    %17 = vsyncpa %s16, 0
    loop: start=0, step=1, limit=4
    $region2: #{tpu_custom_call.1} parent=1 // loop_pre_header
      _
    $region3: #{tpu_custom_call.1} parent=1 // loop_header
      %s19 = sphi 0, %s23
      %p20 = scmp.ge.s32.totalorder %s19, 4
      %s29 = sphi 0, %s31
      %s32 = sphi 0, %s29
      %s33 = sphi 0, %s32
      %s49 = sphi 0, %s33
      %s53 = sphi 0, %s53
      %s55 = sphi 0, %s53
      %s56 = sphi 0, %s55
      %s70 = sphi 0, %s56
      %s74 = sphi 0, %s74
      %s76 = sphi 0, %s74
      %s77 = sphi 0, %s76
      %s91 = sphi 0, %s77
      %s95 = sphi 0, %s95
      %s97 = sphi 0, %s95
      %s98 = sphi 0, %s97
      %s112 = sphi 0, %s98
      %s116 = sphi 0, %s116
      %s118 = sphi 0, %s116
      %s119 = sphi 0, %s118
      %s133 = sphi 0, %s119
      %s137 = sphi 0, %s137
      %s139 = sphi 0, %s137
      %s140 = sphi 0, %s139
      %s154 = sphi 0, %s140
      %s160 = sphi 0, %s162
      %s163 = sphi 0, %s160
      %s164 = sphi 0, %s163
      %s180 = sphi 0, %s164
    $region4: #{tpu_custom_call.1} parent=1 // loop_header_branch
      %22 = sbr.rel (%p20) target = $region8
    $region5: #{tpu_custom_call.1} parent=1 // loop_body
      %s24 = ssub.s32 %s19, 1
      %s25 = ssub.s32 %s19, 2
      %s26 = sadd.s32 %s19, 1
      %s27 = ssub.s32 %s19, %s26
      %p28 = scmp.eq.s32.totalorder %s27, 0
      %s30 = sadd.s32 %s29, 1
      %s31 = scalar_select %p28, %s29, %s30
      %p34 = pneg %p28
      %p35 = scmp.eq.s32.totalorder %s19, 1
      %p36 = por %p34, %p35
      %p37 = scmp.ne.s32.totalorder %s29, %s32
      %p38 = scmp.eq.s32.totalorder %s19, 0
      %p39 = por %p37, %p38
      %p40 = scmp.ne.s32.totalorder %s29, %s32
      %p41 = scmp.eq.s32.totalorder %s24, 1
      %p42 = por %p40, %p41
      %p43 = scmp.ne.s32.totalorder %s32, %s33
      %p44 = scmp.eq.s32.totalorder %s24, 0
      %p45 = por %p43, %p44
      %p46 = scmp.ne.s32.totalorder %s32, %s33
      %p47 = scmp.eq.s32.totalorder %s25, 1
      %p48 = por %p46, %p47
      %p50 = scmp.ne.s32.totalorder %s33, %s49
      %p51 = scmp.eq.s32.totalorder %s25, 0
      %p52 = por %p50, %p51
      %s54 = sadd.s32 %s53, 1
      %p57 = scmp.eq.s32.totalorder %s19, 1
      %p58 = scmp.ne.s32.totalorder %s53, %s55
      %p59 = scmp.eq.s32.totalorder %s19, 0
      %p60 = por %p58, %p59
      %p61 = scmp.ne.s32.totalorder %s53, %s55
      %p62 = scmp.eq.s32.totalorder %s24, 1
      %p63 = por %p61, %p62
      %p64 = scmp.ne.s32.totalorder %s55, %s56
      %p65 = scmp.eq.s32.totalorder %s24, 0
      %p66 = por %p64, %p65
      %p67 = scmp.ne.s32.totalorder %s55, %s56
      %p68 = scmp.eq.s32.totalorder %s25, 1
      %p69 = por %p67, %p68
      %p71 = scmp.ne.s32.totalorder %s56, %s70
      %p72 = scmp.eq.s32.totalorder %s25, 0
      %p73 = por %p71, %p72
      %s75 = sadd.s32 %s74, 1
      %p78 = scmp.eq.s32.totalorder %s19, 1
      %p79 = scmp.ne.s32.totalorder %s74, %s76
      %p80 = scmp.eq.s32.totalorder %s19, 0
      %p81 = por %p79, %p80
      %p82 = scmp.ne.s32.totalorder %s74, %s76
      %p83 = scmp.eq.s32.totalorder %s24, 1
      %p84 = por %p82, %p83
      %p85 = scmp.ne.s32.totalorder %s76, %s77
      %p86 = scmp.eq.s32.totalorder %s24, 0
      %p87 = por %p85, %p86
      %p88 = scmp.ne.s32.totalorder %s76, %s77
      %p89 = scmp.eq.s32.totalorder %s25, 1
      %p90 = por %p88, %p89
      %p92 = scmp.ne.s32.totalorder %s77, %s91
      %p93 = scmp.eq.s32.totalorder %s25, 0
      %p94 = por %p92, %p93
      %s96 = sadd.s32 %s95, 1
      %p99 = scmp.eq.s32.totalorder %s19, 1
      %p100 = scmp.ne.s32.totalorder %s95, %s97
      %p101 = scmp.eq.s32.totalorder %s19, 0
      %p102 = por %p100, %p101
      %p103 = scmp.ne.s32.totalorder %s95, %s97
      %p104 = scmp.eq.s32.totalorder %s24, 1
      %p105 = por %p103, %p104
      %p106 = scmp.ne.s32.totalorder %s97, %s98
      %p107 = scmp.eq.s32.totalorder %s24, 0
      %p108 = por %p106, %p107
      %p109 = scmp.ne.s32.totalorder %s97, %s98
      %p110 = scmp.eq.s32.totalorder %s25, 1
      %p111 = por %p109, %p110
      %p113 = scmp.ne.s32.totalorder %s98, %s112
      %p114 = scmp.eq.s32.totalorder %s25, 0
      %p115 = por %p113, %p114
      %s117 = sadd.s32 %s116, 1
      %p120 = scmp.eq.s32.totalorder %s19, 1
      %p121 = scmp.ne.s32.totalorder %s116, %s118
      %p122 = scmp.eq.s32.totalorder %s19, 0
      %p123 = por %p121, %p122
      %p124 = scmp.ne.s32.totalorder %s116, %s118
      %p125 = scmp.eq.s32.totalorder %s24, 1
      %p126 = por %p124, %p125
      %p127 = scmp.ne.s32.totalorder %s118, %s119
      %p128 = scmp.eq.s32.totalorder %s24, 0
      %p129 = por %p127, %p128
      %p130 = scmp.ne.s32.totalorder %s118, %s119
      %p131 = scmp.eq.s32.totalorder %s25, 1
      %p132 = por %p130, %p131
      %p134 = scmp.ne.s32.totalorder %s119, %s133
      %p135 = scmp.eq.s32.totalorder %s25, 0
      %p136 = por %p134, %p135
      %s138 = sadd.s32 %s137, 1
      %p141 = scmp.eq.s32.totalorder %s19, 1
      %p142 = scmp.ne.s32.totalorder %s137, %s139
      %p143 = scmp.eq.s32.totalorder %s19, 0
      %p144 = por %p142, %p143
      %p145 = scmp.ne.s32.totalorder %s137, %s139
      %p146 = scmp.eq.s32.totalorder %s24, 1
      %p147 = por %p145, %p146
      %p148 = scmp.ne.s32.totalorder %s139, %s140
      %p149 = scmp.eq.s32.totalorder %s24, 0
      %p150 = por %p148, %p149
      %p151 = scmp.ne.s32.totalorder %s139, %s140
      %p152 = scmp.eq.s32.totalorder %s25, 1
      %p153 = por %p151, %p152
      %p155 = scmp.ne.s32.totalorder %s140, %s154
      %p156 = scmp.eq.s32.totalorder %s25, 0
      %p157 = por %p155, %p156
      %s158 = ssub.s32 %s19, %s26
      %p159 = scmp.eq.s32.totalorder %s158, 0
      %s161 = sadd.s32 %s160, 1
      %s162 = scalar_select %p159, %s160, %s161
      %p165 = pneg %p159
      %p166 = scmp.eq.s32.totalorder %s19, 1
      %p167 = por %p165, %p166
      %p168 = scmp.ne.s32.totalorder %s160, %s163
      %p169 = scmp.eq.s32.totalorder %s19, 0
      %p170 = por %p168, %p169
      %p171 = scmp.ne.s32.totalorder %s160, %s163
      %p172 = scmp.eq.s32.totalorder %s24, 1
      %p173 = por %p171, %p172
      %p174 = scmp.ne.s32.totalorder %s163, %s164
      %p175 = scmp.eq.s32.totalorder %s24, 0
      %p176 = por %p174, %p175
      %p177 = scmp.ne.s32.totalorder %s163, %s164
      %p178 = scmp.eq.s32.totalorder %s25, 1
      %p179 = por %p177, %p178
      %p181 = scmp.ne.s32.totalorder %s164, %s180
      %p182 = scmp.eq.s32.totalorder %s25, 0
      %p183 = por %p181, %p182
      %p184 = scmp.le.s32.totalorder 1, %s19
      %p185 = scmp.lt.s32.totalorder %s19, 3
      %p186 = pnand %p184, %p185
      %p187 = pneg %p186
      // Predicated region
      $region9: #{tpu_custom_call.1} parent=5 // pred_check
        _
      $region10: #{tpu_custom_call.1} parent=5 // pred_check_branch
        %189 = sbr.rel (%p186) target = $region12
      $region11: #{tpu_custom_call.1} parent=5 // pred_region
        %s190 = ssub.s32 %s19, 1
        // Predicated region
        $region13: #{tpu_custom_call.1} parent=11 // pred_check
          %p191 = pneg %p66
        $region14: #{tpu_custom_call.1} parent=11 // pred_check_branch
          %193 = sbr.rel (%p191) target = $region16
        $region15: #{tpu_custom_call.1} parent=11 // pred_region
          _
        $region16: #{tpu_custom_call.1} parent=11 // pred_fallthru
          _
        // Predicated region
        $region17: #{tpu_custom_call.1} parent=11 // pred_check
          %p194 = pneg %p87
        $region18: #{tpu_custom_call.1} parent=11 // pred_check_branch
          %196 = sbr.rel (%p194) target = $region20
        $region19: #{tpu_custom_call.1} parent=11 // pred_region
          _
        $region20: #{tpu_custom_call.1} parent=11 // pred_fallthru
          _
        // Predicated region
        $region21: #{tpu_custom_call.1} parent=11 // pred_check
          %p197 = pneg %p108
        $region22: #{tpu_custom_call.1} parent=11 // pred_check_branch
          %199 = sbr.rel (%p197) target = $region24
        $region23: #{tpu_custom_call.1} parent=11 // pred_region
          _
        $region24: #{tpu_custom_call.1} parent=11 // pred_fallthru
          _
        // Predicated region
        $region25: #{tpu_custom_call.1} parent=11 // pred_check
          %p200 = pneg %p129
        $region26: #{tpu_custom_call.1} parent=11 // pred_check_branch
          %202 = sbr.rel (%p200) target = $region28
        $region27: #{tpu_custom_call.1} parent=11 // pred_region
          _
        $region28: #{tpu_custom_call.1} parent=11 // pred_fallthru
          _
        // Predicated region
        $region29: #{tpu_custom_call.1} parent=11 // pred_check
          %p203 = pneg %p150
        $region30: #{tpu_custom_call.1} parent=11 // pred_check_branch
          %205 = sbr.rel (%p203) target = $region32
        $region31: #{tpu_custom_call.1} parent=11 // pred_region
          _
        $region32: #{tpu_custom_call.1} parent=11 // pred_fallthru
          _
      $region12: #{tpu_custom_call.1} parent=5 // pred_fallthru
        _
      %p206 = scmp.lt.s32.totalorder %s19, 2
      // Predicated region
      $region33: #{tpu_custom_call.1} parent=5 // pred_check
        %p207 = pneg %p206
      $region34: #{tpu_custom_call.1} parent=5 // pred_check_branch
        %209 = sbr.rel (%p207) target = $region36
      $region35: #{tpu_custom_call.1} parent=5 // pred_region
        // Predicated region
        $region37: #{tpu_custom_call.1} parent=35 // pred_check
          %p210 = pneg %p39
        $region38: #{tpu_custom_call.1} parent=35 // pred_check_branch
          %212 = sbr.rel (%p210) target = $region40
        $region39: #{tpu_custom_call.1} parent=35 // pred_region
          %s213 = sand.u32 %s29, 1
          %s214 = scalar_lea.sflag [#allocation4], %s213
          %s215 = sand.u32 %s29, 1
          %s216 = smul.addr %s215, 128
          %s217 = scalar_lea.vmem [#allocation3], %s216
          %219 = vsyncadd %s214, 0
          %s220 = smul.addr %s19, 16
          %s221 = smul.addr %s220, 8
          %s222 = scalar_lea.hbm %s0, %s221
          %s223 = sshll.u32 %s222, 4
          %s224 = int_to_ptr.hbm [resolvable:$true] %s223
          %s225 = sshll.u32 %s217, 4
          %s226 = int_to_ptr.vmem [resolvable:$true] %s225
          %231 = dma.hbm_to_vmem [thread:$0]  %s224, 2048, %s226, %s214, 256, 256, 16
        $region40: #{tpu_custom_call.1} parent=35 // pred_fallthru
          _
      $region36: #{tpu_custom_call.1} parent=5 // pred_fallthru
        _
      %p232 = scmp.le.s32.totalorder 1, %s19
      %p233 = scmp.lt.s32.totalorder %s19, 3
      %p234 = pnand %p232, %p233
      %p235 = pneg %p234
      // Predicated region
      $region41: #{tpu_custom_call.1} parent=5 // pred_check
        _
      $region42: #{tpu_custom_call.1} parent=5 // pred_check_branch
        %237 = sbr.rel (%p234) target = $region44
      $region43: #{tpu_custom_call.1} parent=5 // pred_region
        %s238 = ssub.s32 %s19, 1
        %s239 = sand.u32 %s32, 1
        %s240 = scalar_lea.sflag [#allocation4], %s239
        %s241 = sand.u32 %s32, 1
        %s242 = smul.addr %s241, 128
        %s243 = scalar_lea.vmem [#allocation3], %s242
        // Predicated region
        $region45: #{tpu_custom_call.1} parent=43 // pred_check
          %p244 = pneg %p45
        $region46: #{tpu_custom_call.1} parent=43 // pred_check_branch
          %246 = sbr.rel (%p244) target = $region48
        $region47: #{tpu_custom_call.1} parent=43 // pred_region
          %248 = dma.done %s240, 2048
        $region48: #{tpu_custom_call.1} parent=43 // pred_fallthru
          _
        %s249 = sand.u32 %s32, 1
        %s250 = scalar_lea.sflag [#allocation4], %s249
        %s251 = sand.u32 %s32, 1
        %s252 = smul.addr %s251, 128
        %s253 = scalar_lea.vmem [#allocation3], %s252
        %p254 = pneg %p45
        %p255 = pneg %p42
        %p256 = pneg %p66
        %p257 = pneg %p63
        %p258 = pneg %p87
        %p259 = pneg %p84
        %p260 = pneg %p108
        %p261 = pneg %p105
        %p262 = pneg %p129
        %p263 = pneg %p126
        %p264 = pneg %p150
        %p265 = pneg %p147
        %p266 = pneg %p176
        %p267 = pneg %p173
        %s268 = sand.u32 %s163, 1
        %s269 = scalar_lea.sflag [#allocation5], %s268
        %s270 = sand.u32 %s163, 1
        %s271 = smul.addr %s270, 128
        %s272 = scalar_lea.vmem [#allocation6], %s271
        %v273 = vld [vmem:[%s243] sm:$0xff]
        %v274 = vld [vmem:[%s243 + $0x8] sm:$0xff]
        %v275 = vld [vmem:[%s243 + $0x10] sm:$0xff]
        %v276 = vld [vmem:[%s243 + $0x18] sm:$0xff]
        %v277 = vld [vmem:[%s243 + $0x20] sm:$0xff]
        %v278 = vld [vmem:[%s243 + $0x28] sm:$0xff]
        %v279 = vld [vmem:[%s243 + $0x30] sm:$0xff]
        %v280 = vld [vmem:[%s243 + $0x38] sm:$0xff]
        %v281 = vld [vmem:[%s243 + $0x40] sm:$0xff]
        %v282 = vld [vmem:[%s243 + $0x48] sm:$0xff]
        %v283 = vld [vmem:[%s243 + $0x50] sm:$0xff]
        %v284 = vld [vmem:[%s243 + $0x58] sm:$0xff]
        %v285 = vld [vmem:[%s243 + $0x60] sm:$0xff]
        %v286 = vld [vmem:[%s243 + $0x68] sm:$0xff]
        %v287 = vld [vmem:[%s243 + $0x70] sm:$0xff]
        %v288 = vld [vmem:[%s243 + $0x78] sm:$0xff]
        %v289 = vadd.f32 %v273, %v274
        %290 = vadd.xlane.f32.xlu0 %v289
        %v291 = vpop.xlane.xlu0 %290
        %v292 = vadd.f32 %v275, %v276
        %293 = vadd.xlane.f32.xlu0 %v292
        %v294 = vpop.xlane.xlu0 %293
        %v295 = vadd.f32 %v277, %v278
        %296 = vadd.xlane.f32.xlu0 %v295
        %v297 = vpop.xlane.xlu0 %296
        %v298 = vadd.f32 %v279, %v280
        %299 = vadd.xlane.f32.xlu0 %v298
        %v300 = vpop.xlane.xlu0 %299
        %v301 = vadd.f32 %v281, %v282
        %302 = vadd.xlane.f32.xlu0 %v301
        %v303 = vpop.xlane.xlu0 %302
        %v304 = vadd.f32 %v283, %v284
        %305 = vadd.xlane.f32.xlu0 %v304
        %v306 = vpop.xlane.xlu0 %305
        %v307 = vadd.f32 %v285, %v286
        %308 = vadd.xlane.f32.xlu0 %v307
        %v309 = vpop.xlane.xlu0 %308
        %v310 = vadd.f32 %v287, %v288
        %311 = vadd.xlane.f32.xlu0 %v310
        %v312 = vpop.xlane.xlu0 %311
        %v313 = vmul.f32 %v291, 0.00390625
        %v314 = vmul.f32 %v294, 0.00390625
        %v315 = vmul.f32 %v297, 0.00390625
        %v316 = vmul.f32 %v300, 0.00390625
        %v317 = vmul.f32 %v303, 0.00390625
        %v318 = vmul.f32 %v306, 0.00390625
        %v319 = vmul.f32 %v309, 0.00390625
        %v320 = vmul.f32 %v312, 0.00390625
        %v321 = vld [vmem:[%s1] sm:$0xff]
        %v322 = vld [vmem:[%s1 + $0x8] sm:$0xff]
        %v323 = vld [vmem:[%s1 + $0x10] sm:$0xff]
        %v324 = vld [vmem:[%s1 + $0x18] sm:$0xff]
        %v325 = vld [vmem:[%s1 + $0x20] sm:$0xff]
        %v326 = vld [vmem:[%s1 + $0x28] sm:$0xff]
        %v327 = vld [vmem:[%s1 + $0x30] sm:$0xff]
        %v328 = vld [vmem:[%s1 + $0x38] sm:$0xff]
        %v329 = vld [vmem:[%s2] sm:$0x1]
        %v338 = vlaneseq
        %v339 = vand.u32 %v338, 127
        %v340 = vperm.slane %v313, %v339
        %v341 = vadd.s32 %v339, 4294967288
        %v342 = vperm.slane %v314, %v341
        %vm343 = vcmask 130112
        %v344 = vsel %vm343, %v342, %v340
        %v345 = vadd.s32 %v339, 4294967280
        %v346 = vperm.slane %v315, %v345
        %vm347 = vcmask 195712
        %v348 = vsel %vm347, %v346, %v344
        %v349 = vadd.s32 %v339, 4294967272
        %v350 = vperm.slane %v316, %v349
        %vm351 = vcmask 261312
        %v352 = vsel %vm351, %v350, %v348
        %v353 = vadd.s32 %v339, 4294967264
        %v354 = vperm.slane %v317, %v353
        %vm355 = vcmask 326912
        %v356 = vsel %vm355, %v354, %v352
        %v357 = vadd.s32 %v339, 4294967256
        %v358 = vperm.slane %v318, %v357
        %vm359 = vcmask 392512
        %v360 = vsel %vm359, %v358, %v356
        %v361 = vadd.s32 %v339, 4294967248
        %v362 = vperm.slane %v319, %v361
        %vm363 = vcmask 458112
        %v364 = vsel %vm363, %v362, %v360
        %v365 = vadd.s32 %v339, 4294967240
        %v366 = vperm.slane %v320, %v365
        %vm367 = vcmask 523712
        %v368 = vsel %vm367, %v366, %v364
        %vm369 = vcmask 523264
        %v370 = vsel %vm369, %v368, 0
        %372 = vmatpush.msra.mxu0 0.0
        %373 = vmatpush.msra.mxu0 0.0
        %374 = vmatpush.msra.mxu0 0.0
        %375 = vmatpush.msra.mxu0 0.0
        %376 = vmatpush.msra.mxu0 0.0
        %377 = vmatpush.msra.mxu0 0.0
        %378 = vmatpush.msra.mxu0 0.0
        %379 = vmatpush.msra.mxu0 0.0
        %380 = vmatpush.msra.mxu0 %v328
        %381 = vmatpush.msra.mxu0 %v327
        %382 = vmatpush.msra.mxu0 %v326
        %383 = vmatpush.msra.mxu0 %v325
        %384 = vmatpush.msra.mxu0 %v324
        %385 = vmatpush.msra.mxu0 %v323
        %386 = vmatpush.msra.mxu0 %v322
        %387 = vmatpush.msra.mxu0 %v321
        %388 = vmatmul.f32.gmra.mxu0 %v370
        %v389 = vpop.f32.mrf.mxu0
        %v390 = vadd.f32 %v329, %v389
        %391 = vdwg.mxu0
        %vm392 = vcmp.ge.f32.partialorder %v390, 0.0
        %s393 = sld [smem:[#allocation2]]
        %v394 = vstv %s393
        %v395 = vmul.f32 %v394, %v390
        %v396 = vsel %vm392, %v390, %v395
        %v397 = vld [vmem:[%s4] sm:$0xf]
        %v398 = vld [vmem:[%s5] sm:$0x1]
        %vm399 = vcmask 31744
        %v401 = vsel %vm399, %v396, 0
        %vm403 = vcmask 1043456
        %v405 = vsel %vm403, %v397, 0
        %407 = vmatpush.msra.mxu0 0.0
        %408 = vmatpush.msra.mxu0 0.0
        %409 = vmatpush.msra.mxu0 0.0
        %410 = vmatpush.msra.mxu0 0.0
        %411 = vmatpush.msra.mxu0 0.0
        %412 = vmatpush.msra.mxu0 0.0
        %413 = vmatpush.msra.mxu0 0.0
        %414 = vmatpush.msra.mxu0 0.0
        %415 = vmatpush.msra.mxu0 0.0
        %416 = vmatpush.msra.mxu0 0.0
        %417 = vmatpush.msra.mxu0 0.0
        %418 = vmatpush.msra.mxu0 0.0
        %419 = vmatpush.msra.mxu0 0.0
        %420 = vmatpush.msra.mxu0 0.0
        %421 = vmatpush.msra.mxu0 0.0
        %422 = vmatpush.msra.mxu0 %v405
        %423 = vmatmul.f32.gmra.mxu0 %v401
        %v424 = vpop.f32.mrf.mxu0
        %v425 = vadd.f32 %v398, %v424
        %426 = vdwg.mxu0
        %v427 = vxor.u32 %v425, 2147483648
        %v428 = vmul.f32 %v427, 1.442695
        %v429 = vpow.pop %v428
        %v430 = vadd.f32 %v429, 1.0
        %v431 = vrcp.pop %v430
        %v432 = vmul.f32 %v430, %v431
        %v433 = vsub.f32 1.0, %v432
        %v434 = vmul.f32 %v431, %v433
        %v435 = vadd.f32 %v431, %v434
        %vm436 = vweird.f32 %v430
        %vm437 = vweird.f32 %v431
        %vm438 = vmor %vm436, %vm437
        %v439 = vsel %vm438, %v431, %v435
        %v440 = vand.u32 2147483647, %v430
        %vm441 = vcmp.eq.f32.partialorder %v440, 8.507059e+37
        %v442 = vand.u32 %v430, 2147483648
        %v443 = vor.u32 1.1754944e-38, %v442
        %v444 = vsel %vm441, %v443, %v439
        %v445 = vmul.f32 1.0, %v444
        %v446 = vperm.slane %v445, 0
        %v447 = vlaneseq
        %v448 = vshrl.u32 %v447, 7
        %450 = vset.pattern.permute.xlu0 %v448
        %451 = vperm.xlu0 %450, %v446
        %v452 = vpop.permute.xlu0 %451
        %v453 = vlaneseq
        %v454 = vshrl.u32 %v453, 7
        %v455 = vadd.s32 %v454, 8
        %456 = vset.pattern.permute.xlu0 %v455
        %457 = vperm.xlu0 %456, %v446
        %v458 = vpop.permute.xlu0 %457
        %v459 = vlaneseq
        %v460 = vshrl.u32 %v459, 7
        %v461 = vadd.s32 %v460, 16
        %462 = vset.pattern.permute.xlu0 %v461
        %463 = vperm.xlu0 %462, %v446
        %v464 = vpop.permute.xlu0 %463
        %v465 = vlaneseq
        %v466 = vshrl.u32 %v465, 7
        %v467 = vadd.s32 %v466, 24
        %468 = vset.pattern.permute.xlu0 %v467
        %469 = vperm.xlu0 %468, %v446
        %v470 = vpop.permute.xlu0 %469
        %v471 = vlaneseq
        %v472 = vshrl.u32 %v471, 7
        %v473 = vadd.s32 %v472, 32
        %474 = vset.pattern.permute.xlu0 %v473
        %475 = vperm.xlu0 %474, %v446
        %v476 = vpop.permute.xlu0 %475
        %v477 = vlaneseq
        %v478 = vshrl.u32 %v477, 7
        %v479 = vadd.s32 %v478, 40
        %480 = vset.pattern.permute.xlu0 %v479
        %481 = vperm.xlu0 %480, %v446
        %v482 = vpop.permute.xlu0 %481
        %v483 = vlaneseq
        %v484 = vshrl.u32 %v483, 7
        %v485 = vadd.s32 %v484, 48
        %486 = vset.pattern.permute.xlu0 %v485
        %487 = vperm.xlu0 %486, %v446
        %v488 = vpop.permute.xlu0 %487
        %v489 = vlaneseq
        %v490 = vshrl.u32 %v489, 7
        %v491 = vadd.s32 %v490, 56
        %492 = vset.pattern.permute.xlu0 %v491
        %493 = vperm.xlu0 %492, %v446
        %v494 = vpop.permute.xlu0 %493
        %v495 = vmul.f32 %v273, %v452
        %v496 = vmul.f32 %v274, %v452
        %v497 = vmul.f32 %v275, %v458
        %v498 = vmul.f32 %v276, %v458
        %v499 = vmul.f32 %v277, %v464
        %v500 = vmul.f32 %v278, %v464
        %v501 = vmul.f32 %v279, %v470
        %v502 = vmul.f32 %v280, %v470
        %v503 = vmul.f32 %v281, %v476
        %v504 = vmul.f32 %v282, %v476
        %v505 = vmul.f32 %v283, %v482
        %v506 = vmul.f32 %v284, %v482
        %v507 = vmul.f32 %v285, %v488
        %v508 = vmul.f32 %v286, %v488
        %v509 = vmul.f32 %v287, %v494
        %v510 = vmul.f32 %v288, %v494
        %511 = vst [vmem:[%s272] sm:$0xff] %v495
        %512 = vst [vmem:[%s272 + $0x8] sm:$0xff] %v496
        %513 = vst [vmem:[%s272 + $0x10] sm:$0xff] %v497
        %514 = vst [vmem:[%s272 + $0x18] sm:$0xff] %v498
        %515 = vst [vmem:[%s272 + $0x20] sm:$0xff] %v499
        %516 = vst [vmem:[%s272 + $0x28] sm:$0xff] %v500
        %517 = vst [vmem:[%s272 + $0x30] sm:$0xff] %v501
        %518 = vst [vmem:[%s272 + $0x38] sm:$0xff] %v502
        %519 = vst [vmem:[%s272 + $0x40] sm:$0xff] %v503
        %520 = vst [vmem:[%s272 + $0x48] sm:$0xff] %v504
        %521 = vst [vmem:[%s272 + $0x50] sm:$0xff] %v505
        %522 = vst [vmem:[%s272 + $0x58] sm:$0xff] %v506
        %523 = vst [vmem:[%s272 + $0x60] sm:$0xff] %v507
        %524 = vst [vmem:[%s272 + $0x68] sm:$0xff] %v508
        %525 = vst [vmem:[%s272 + $0x70] sm:$0xff] %v509
        %526 = vst [vmem:[%s272 + $0x78] sm:$0xff] %v510
        %s527 = sand.u32 %s163, 1
        %s528 = scalar_lea.sflag [#allocation5], %s527
        %s529 = sand.u32 %s163, 1
        %s530 = smul.addr %s529, 128
        %s531 = scalar_lea.vmem [#allocation6], %s530
        // Predicated region
        $region49: #{tpu_custom_call.1} parent=43 // pred_check
          %p532 = pneg %p173
        $region50: #{tpu_custom_call.1} parent=43 // pred_check_branch
          %534 = sbr.rel (%p532) target = $region52
        $region51: #{tpu_custom_call.1} parent=43 // pred_region
          %536 = vsyncadd %s528, 0
          %s537 = smul.addr %s24, 16
          %s538 = smul.addr %s537, 8
          %s539 = scalar_lea.hbm %s6, %s538
          %s540 = sshll.u32 %s531, 4
          %s541 = int_to_ptr.vmem [resolvable:$true] %s540
          %s542 = sshll.u32 %s539, 4
          %s543 = int_to_ptr.hbm [resolvable:$true] %s542
          %548 = dma.vmem_to_hbm [thread:$0]  %s541, 2048, %s543, %s528, 256, 256, 16
        $region52: #{tpu_custom_call.1} parent=43 // pred_fallthru
          _
      $region44: #{tpu_custom_call.1} parent=5 // pred_fallthru
        _
      %p549 = scmp.le.s32.totalorder 2, %s19
      // Predicated region
      $region53: #{tpu_custom_call.1} parent=5 // pred_check
        %p550 = pneg %p549
      $region54: #{tpu_custom_call.1} parent=5 // pred_check_branch
        %552 = sbr.rel (%p550) target = $region56
      $region55: #{tpu_custom_call.1} parent=5 // pred_region
        %s553 = ssub.s32 %s19, 2
        // Predicated region
        $region57: #{tpu_custom_call.1} parent=55 // pred_check
          %p554 = pneg %p179
        $region58: #{tpu_custom_call.1} parent=55 // pred_check_branch
          %556 = sbr.rel (%p554) target = $region60
        $region59: #{tpu_custom_call.1} parent=55 // pred_region
          %s557 = sand.u32 %s164, 1
          %s558 = scalar_lea.sflag [#allocation5], %s557
          %s559 = sand.u32 %s164, 1
          %s560 = smul.addr %s559, 128
          %s561 = scalar_lea.vmem [#allocation6], %s560
          %563 = dma.done %s558, 2048
        $region60: #{tpu_custom_call.1} parent=55 // pred_fallthru
          _
      $region56: #{tpu_custom_call.1} parent=5 // pred_fallthru
        _
    $region6: #{tpu_custom_call.1} parent=1 // loop_footer
      %s23 = sadd.s32 1, %s19
    $region7: #{tpu_custom_call.1} parent=1 // loop_footer_branch
      %18 = sbr.rel target = $region3
    $region8: #{tpu_custom_call.1} parent=1 // loop_exit
      _
    %564 = vsyncpa [#allocation4], 1
    %s565 = scalar_lea.sflag [#allocation4], 1
    %566 = vsyncpa %s565, 1
    %567 = vsyncpa [#allocation5], 1
    %s568 = scalar_lea.sflag [#allocation5], 1
    %569 = vsyncpa %s568, 1

</llo_original>
